<compile_context>
chip_gen: v7x
topology: tpu7x:2x2x1
jax: 0.10.0
libtpu: 0.0.40
codegen_flags: <defaults>
</compile_context>

<pallas_src>
import jax
import jax.numpy as jnp
from jax.experimental import pallas as pl
from jax.experimental.pallas import tpu as pltpu

ATT_REPEAT = 3  # the module hard-codes .repeat(1, 3, 1, 1)


def fusion_kernel(ag_ref, al_ref, gr_ref, lr_ref, res_ref, latt_ref, gatt_ref):
    # attention blocks: (1, 1, TR, L); result blocks: (1, C, TR, L)
    ag = ag_ref[0, 0].astype(jnp.float32)        # (TR, L) logits from attention_global
    al = al_ref[0, 0].astype(jnp.float32)        # (TR, L) logits from attention_local

    # 2-way softmax == sigmoid of the logit difference: one transcendental per
    # pixel instead of two, no running max, single divide.  Channel 0 of the
    # softmax (from attention_global) weights *local_result* — this swap
    # matches the PyTorch reference exactly.
    e = jnp.exp(al - ag)
    w_loc = 1.0 / (1.0 + e)                      # softmax channel 0
    w_glb = 1.0 - w_loc                          # softmax channel 1

    gr = gr_ref[0].astype(jnp.float32)           # (C, TR, L)
    lr = lr_ref[0].astype(jnp.float32)           # (C, TR, L)
    # (TR, L) weights broadcast against the leading channel axis for free.
    res_ref[0] = (w_loc[None] * lr + w_glb[None] * gr).astype(res_ref.dtype)

    # 3x-replicated attention maps (contract of the module).
    latt_ref[0] = jnp.broadcast_to(w_loc.astype(latt_ref.dtype), latt_ref.shape[1:])
    gatt_ref[0] = jnp.broadcast_to(w_glb.astype(gatt_ref.dtype), gatt_ref.shape[1:])


def _pick_row_tile(R, L, n_batch, max_block_elems=32 * 1024, target_steps=8):
    """Largest multiple-of-8 divisor of R whose (TR, L) per-channel tile stays
    within `max_block_elems` while leaving >= `target_steps` grid steps for
    software pipelining; falls back to the full dim (always a legal block)."""
    divs = [d for d in range(8, R, 8) if R % d == 0]
    if not divs:
        return R
    good = [d for d in divs if d * L <= max_block_elems]
    if not good:
        return min(divs)
    deep = [d for d in good if (R // d) * n_batch >= target_steps]
    return max(deep) if deep else max(good)


def fusion_forward(gloabl_result, local_result, attention_global, attention_local):
    """Inputs/outputs in PyTorch NCHW layout, native dtype preserved.
    Returns (result, local_attention, global_attention)."""
    N, C, H, W = gloabl_result.shape
    HW = H * W
    dtype = gloabl_result.dtype
    itemsize = jnp.dtype(dtype).itemsize

    # Lane-dense 4D view: spatial folded onto (R, L) with L on the 128-wide
    # lane axis, R on sublanes, channels on a leading un-padded block dim.
    if HW % 128 == 0:
        R, L = HW // 128, 128
    else:
        R, L = H, W          # full-W blocks are legal (block dim == array dim)

    gr = gloabl_result.reshape(N, C, R, L)
    lr = local_result.reshape(N, C, R, L)
    ag = attention_global.reshape(N, 1, R, L)
    al = attention_local.reshape(N, 1, R, L)

    TR = _pick_row_tile(R, L, N)
    nt = R // TR

    idx = lambda n, t: (n, 0, t, 0)

    cost = pl.CostEstimate(
        flops=N * HW * (3 + 3 * C),
        transcendentals=N * HW,
        bytes_accessed=itemsize * N * HW * (2 + 2 * C + C + 2 * ATT_REPEAT),
    )

    result, latt, gatt = pl.pallas_call(
        fusion_kernel,
        out_shape=(
            jax.ShapeDtypeStruct((N, C, R, L), dtype),
            jax.ShapeDtypeStruct((N, ATT_REPEAT, R, L), dtype),
            jax.ShapeDtypeStruct((N, ATT_REPEAT, R, L), dtype),
        ),
        grid_spec=pltpu.PrefetchScalarGridSpec(
            num_scalar_prefetch=0,
            grid=(N, nt),
            in_specs=[
                pl.BlockSpec((1, 1, TR, L), idx),            # attention_global
                pl.BlockSpec((1, 1, TR, L), idx),            # attention_local
                pl.BlockSpec((1, C, TR, L), idx),            # gloabl_result
                pl.BlockSpec((1, C, TR, L), idx),            # local_result
            ],
            out_specs=[
                pl.BlockSpec((1, C, TR, L), idx),            # result
                pl.BlockSpec((1, ATT_REPEAT, TR, L), idx),   # local_attention
                pl.BlockSpec((1, ATT_REPEAT, TR, L), idx),   # global_attention
            ],
        ),
        compiler_params=pltpu.CompilerParams(
            dimension_semantics=("parallel", "parallel")),
        cost_estimate=cost,
    )(ag, al, gr, lr)

    return (result.reshape(N, C, H, W),
            latt.reshape(N, ATT_REPEAT, H, W),
            gatt.reshape(N, ATT_REPEAT, H, W))


# ----------------------------- pure-JAX reference -----------------------------
def fusion_ref(gloabl_result, local_result, attention_global, attention_local):
    att = jnp.concatenate([attention_global, attention_local], axis=1)   # (N,2,H,W)
    att2 = jax.nn.softmax(att, axis=1)
    a_loc = att2[:, 0:1]
    a_glb = att2[:, 1:2]
    result = a_loc * local_result + a_glb * gloabl_result
    local_attention = jnp.tile(a_loc, (1, ATT_REPEAT, 1, 1))
    global_attention = jnp.tile(a_glb, (1, ATT_REPEAT, 1, 1))
    return result, local_attention, global_attention


if __name__ == "__main__":
    def run_case(N, C, H, W, seed):
        key = jax.random.PRNGKey(seed)
        k0, k1, k2, k3 = jax.random.split(key, 4)
        gr = jax.random.normal(k0, (N, C, H, W), jnp.float32)
        lr = jax.random.normal(k1, (N, C, H, W), jnp.float32)
        ag = jax.random.normal(k2, (N, 1, H, W), jnp.float32)
        al = jax.random.normal(k3, (N, 1, H, W), jnp.float32)

        out = jax.block_until_ready(fusion_forward(gr, lr, ag, al))
        ref = jax.block_until_ready(fusion_ref(gr, lr, ag, al))

        assert out[0].shape == (N, C, H, W)
        assert out[1].shape == (N, ATT_REPEAT, H, W)
        assert out[2].shape == (N, ATT_REPEAT, H, W)
        for o, r in zip(out, ref):
            err = float(jnp.max(jnp.abs(o - r)))
            assert err < 1e-5, err

    run_case(2, 3, 16, 16, 0)    # small canonical case (HW % 128 == 0, single row-tile)
    run_case(2, 3, 64, 64, 1)    # tiled case: R=32 -> TR=8, grid (2, 4), pipelined
    run_case(1, 3, 24, 20, 2)    # HW % 128 != 0 fallback path (full-W blocks)
    print("KERNEL_OK")
</pallas_src>

<mosaic_0001>
module attributes {stable_mosaic.version = 11 : i64} {
  func.func @fusion_kernel(%arg0: i32, %arg1: i32, %arg2: memref<1x1x2x128xf32, #tpu.memory_space<vmem>>, %arg3: memref<1x1x2x128xf32, #tpu.memory_space<vmem>>, %arg4: memref<1x3x2x128xf32, #tpu.memory_space<vmem>>, %arg5: memref<1x3x2x128xf32, #tpu.memory_space<vmem>>, %arg6: memref<1x3x2x128xf32, #tpu.memory_space<vmem>>, %arg7: memref<1x3x2x128xf32, #tpu.memory_space<vmem>>, %arg8: memref<1x3x2x128xf32, #tpu.memory_space<vmem>>) attributes {dimension_semantics = [#tpu.dimension_semantics<parallel>, #tpu.dimension_semantics<parallel>], iteration_bounds = array<i64: 2, 1>, scalar_prefetch = 0 : i64, scratch_operands = 0 : i64, tpu.core_type = #tpu.core_type<tc>, window_params = [{transform_indices = @transform_0, window_bounds = array<i64: 1, 1, 2, 128>}, {transform_indices = @transform_1, window_bounds = array<i64: 1, 1, 2, 128>}, {transform_indices = @transform_2, window_bounds = array<i64: 1, 3, 2, 128>}, {transform_indices = @transform_3, window_bounds = array<i64: 1, 3, 2, 128>}, {transform_indices = @transform_4, window_bounds = array<i64: 1, 3, 2, 128>}, {transform_indices = @transform_5, window_bounds = array<i64: 1, 3, 2, 128>}, {transform_indices = @transform_6, window_bounds = array<i64: 1, 3, 2, 128>}]} {
    %c0 = arith.constant 0 : index
    %c0_0 = arith.constant 0 : index
    %c0_1 = arith.constant 0 : index
    %c0_2 = arith.constant 0 : index
    %0 = vector.load %arg2[%c0, %c0_0, %c0_1, %c0_2] : memref<1x1x2x128xf32, #tpu.memory_space<vmem>>, vector<1x1x2x128xf32>
    %1 = vector.shape_cast %0 : vector<1x1x2x128xf32> to vector<2x128xf32>
    %c0_3 = arith.constant 0 : index
    %c0_4 = arith.constant 0 : index
    %c0_5 = arith.constant 0 : index
    %c0_6 = arith.constant 0 : index
    %2 = vector.load %arg3[%c0_3, %c0_4, %c0_5, %c0_6] : memref<1x1x2x128xf32, #tpu.memory_space<vmem>>, vector<1x1x2x128xf32>
    %3 = vector.shape_cast %2 : vector<1x1x2x128xf32> to vector<2x128xf32>
    %4 = arith.subf %3, %1 : vector<2x128xf32>
    %5 = math.exp %4 : vector<2x128xf32>
    %cst = arith.constant 1.000000e+00 : f32
    %6 = vector.broadcast %cst : f32 to vector<2x128xf32>
    %7 = arith.addf %6, %5 : vector<2x128xf32>
    %cst_7 = arith.constant 1.000000e+00 : f32
    %8 = vector.broadcast %cst_7 : f32 to vector<2x128xf32>
    %9 = arith.divf %8, %7 : vector<2x128xf32>
    %cst_8 = arith.constant 1.000000e+00 : f32
    %10 = vector.broadcast %cst_8 : f32 to vector<2x128xf32>
    %11 = arith.subf %10, %9 : vector<2x128xf32>
    %c0_9 = arith.constant 0 : index
    %c0_10 = arith.constant 0 : index
    %c0_11 = arith.constant 0 : index
    %c0_12 = arith.constant 0 : index
    %12 = vector.load %arg4[%c0_9, %c0_10, %c0_11, %c0_12] : memref<1x3x2x128xf32, #tpu.memory_space<vmem>>, vector<1x3x2x128xf32>
    %13 = vector.shape_cast %12 : vector<1x3x2x128xf32> to vector<3x2x128xf32>
    %c0_13 = arith.constant 0 : index
    %c0_14 = arith.constant 0 : index
    %c0_15 = arith.constant 0 : index
    %c0_16 = arith.constant 0 : index
    %14 = vector.load %arg5[%c0_13, %c0_14, %c0_15, %c0_16] : memref<1x3x2x128xf32, #tpu.memory_space<vmem>>, vector<1x3x2x128xf32>
    %15 = vector.shape_cast %14 : vector<1x3x2x128xf32> to vector<3x2x128xf32>
    %16 = vector.shape_cast %9 : vector<2x128xf32> to vector<1x2x128xf32>
    %17 = vector.broadcast %16 : vector<1x2x128xf32> to vector<3x2x128xf32>
    %18 = arith.mulf %17, %15 : vector<3x2x128xf32>
    %19 = vector.shape_cast %11 : vector<2x128xf32> to vector<1x2x128xf32>
    %20 = vector.broadcast %19 : vector<1x2x128xf32> to vector<3x2x128xf32>
    %21 = arith.mulf %20, %13 : vector<3x2x128xf32>
    %22 = arith.addf %18, %21 : vector<3x2x128xf32>
    %c0_17 = arith.constant 0 : index
    %c0_18 = arith.constant 0 : index
    %c0_19 = arith.constant 0 : index
    %c0_20 = arith.constant 0 : index
    %23 = vector.load %arg6[%c0_17, %c0_18, %c0_19, %c0_20] : memref<1x3x2x128xf32, #tpu.memory_space<vmem>>, vector<1x3x2x128xf32>
    %24 = vector.shape_cast %23 : vector<1x3x2x128xf32> to vector<3x2x128xf32>
    %25 = vector.shape_cast %22 : vector<3x2x128xf32> to vector<1x3x2x128xf32>
    tpu.vector_store %arg6[%c0_17, %c0_18, %c0_19, %c0_20], %25 {strides = array<i32>} : memref<1x3x2x128xf32, #tpu.memory_space<vmem>>, vector<1x3x2x128xf32>,
    %26 = vector.shape_cast %9 : vector<2x128xf32> to vector<1x2x128xf32>
    %27 = vector.broadcast %26 : vector<1x2x128xf32> to vector<3x2x128xf32>
    %c0_21 = arith.constant 0 : index
    %c0_22 = arith.constant 0 : index
    %c0_23 = arith.constant 0 : index
    %c0_24 = arith.constant 0 : index
    %28 = vector.load %arg7[%c0_21, %c0_22, %c0_23, %c0_24] : memref<1x3x2x128xf32, #tpu.memory_space<vmem>>, vector<1x3x2x128xf32>
    %29 = vector.shape_cast %28 : vector<1x3x2x128xf32> to vector<3x2x128xf32>
    %30 = vector.shape_cast %27 : vector<3x2x128xf32> to vector<1x3x2x128xf32>
    tpu.vector_store %arg7[%c0_21, %c0_22, %c0_23, %c0_24], %30 {strides = array<i32>} : memref<1x3x2x128xf32, #tpu.memory_space<vmem>>, vector<1x3x2x128xf32>,
    %31 = vector.shape_cast %11 : vector<2x128xf32> to vector<1x2x128xf32>
    %32 = vector.broadcast %31 : vector<1x2x128xf32> to vector<3x2x128xf32>
    %c0_25 = arith.constant 0 : index
    %c0_26 = arith.constant 0 : index
    %c0_27 = arith.constant 0 : index
    %c0_28 = arith.constant 0 : index
    %33 = vector.load %arg8[%c0_25, %c0_26, %c0_27, %c0_28] : memref<1x3x2x128xf32, #tpu.memory_space<vmem>>, vector<1x3x2x128xf32>
    %34 = vector.shape_cast %33 : vector<1x3x2x128xf32> to vector<3x2x128xf32>
    %35 = vector.shape_cast %32 : vector<3x2x128xf32> to vector<1x3x2x128xf32>
    tpu.vector_store %arg8[%c0_25, %c0_26, %c0_27, %c0_28], %35 {strides = array<i32>} : memref<1x3x2x128xf32, #tpu.memory_space<vmem>>, vector<1x3x2x128xf32>,
    return
  }
  func.func @transform_0(%arg0: i32, %arg1: i32) -> (i32, i32, i32, i32) {
    %c0_i32 = arith.constant 0 : i32
    %c0_i32_0 = arith.constant 0 : i32
    %c0_i32_1 = arith.constant 0 : i32
    return %arg0, %c0_i32, %arg1, %c0_i32_0 : i32, i32, i32, i32
  }
  func.func @transform_1(%arg0: i32, %arg1: i32) -> (i32, i32, i32, i32) {
    %c0_i32 = arith.constant 0 : i32
    %c0_i32_0 = arith.constant 0 : i32
    %c0_i32_1 = arith.constant 0 : i32
    return %arg0, %c0_i32, %arg1, %c0_i32_0 : i32, i32, i32, i32
  }
  func.func @transform_2(%arg0: i32, %arg1: i32) -> (i32, i32, i32, i32) {
    %c0_i32 = arith.constant 0 : i32
    %c0_i32_0 = arith.constant 0 : i32
    %c0_i32_1 = arith.constant 0 : i32
    return %arg0, %c0_i32, %arg1, %c0_i32_0 : i32, i32, i32, i32
  }
  func.func @transform_3(%arg0: i32, %arg1: i32) -> (i32, i32, i32, i32) {
    %c0_i32 = arith.constant 0 : i32
    %c0_i32_0 = arith.constant 0 : i32
    %c0_i32_1 = arith.constant 0 : i32
    return %arg0, %c0_i32, %arg1, %c0_i32_0 : i32, i32, i32, i32
  }
  func.func @transform_4(%arg0: i32, %arg1: i32) -> (i32, i32, i32, i32) {
    %c0_i32 = arith.constant 0 : i32
    %c0_i32_0 = arith.constant 0 : i32
    %c0_i32_1 = arith.constant 0 : i32
    return %arg0, %c0_i32, %arg1, %c0_i32_0 : i32, i32, i32, i32
  }
  func.func @transform_5(%arg0: i32, %arg1: i32) -> (i32, i32, i32, i32) {
    %c0_i32 = arith.constant 0 : i32
    %c0_i32_0 = arith.constant 0 : i32
    %c0_i32_1 = arith.constant 0 : i32
    return %arg0, %c0_i32, %arg1, %c0_i32_0 : i32, i32, i32, i32
  }
  func.func @transform_6(%arg0: i32, %arg1: i32) -> (i32, i32, i32, i32) {
    %c0_i32 = arith.constant 0 : i32
    %c0_i32_0 = arith.constant 0 : i32
    %c0_i32_1 = arith.constant 0 : i32
    return %arg0, %c0_i32, %arg1, %c0_i32_0 : i32, i32, i32, i32
  }
}

</mosaic_0001>

<llo_original>
// kernel: tpu_custom_call.1
$region0: #{tpu_custom_call.1}
  #allocation0 [shape = 'u32[]', space=smem, size = 0x4, offset = 0x4, fixed_abs, tag = 'smem constant byte address 0x4 - core index']
  #allocation1 [shape = 'u32[144,128]{1,0:T(1,128)}', space=vmem, size = 0x12000, scoped, tag = 'internal scratch']
  %s0 = inlined_call_operand.hbm [shape: f32[2,1,2,128], index: 0, kind: input, shape index: {}]
  %s1 = inlined_call_operand.hbm [shape: f32[2,1,2,128], index: 1, kind: input, shape index: {}]
  %s2 = inlined_call_operand.hbm [shape: f32[2,3,2,128], index: 2, kind: input, shape index: {}]
  %s3 = inlined_call_operand.hbm [shape: f32[2,3,2,128], index: 3, kind: input, shape index: {}]
  %s4 = inlined_call_operand.hbm [shape: f32[2,3,2,128], index: 4, kind: output, shape index: {0}]
  %s5 = inlined_call_operand.hbm [shape: f32[2,3,2,128], index: 5, kind: output, shape index: {1}]
  %s6 = inlined_call_operand.hbm [shape: f32[2,3,2,128], index: 6, kind: output, shape index: {2}]
  %7 = xla_tuple %s4, %s5, %s6
  %s8 = sld [smem:[#allocation0]]
  $region81: #{tpu_custom_call.1} parent=0
    _
  %s10 = ssub.s32 1, %s8
  %s11 = scalar_select 0, %s10, %s8
  $region1: #{tpu_custom_call.1} parent=0
    #allocation2 [shape = 'u8[2048]{0}', space=vmem, size = 0x800, scoped, tag = 'input window, operand 0']
    #allocation3 [shape = 's32[2]{0}', space=sflag, size = 0x8, scoped, tag = 'scoped memory for tpu_custom_call.1']
    #allocation4 [shape = 's32[2]{0}', space=sflag, size = 0x8, scoped, tag = 'scoped memory for tpu_custom_call.1']
    #allocation5 [shape = 'u8[2048]{0}', space=vmem, size = 0x800, scoped, tag = 'input window, operand 1']
    #allocation6 [shape = 's32[2]{0}', space=sflag, size = 0x8, scoped, tag = 'scoped memory for tpu_custom_call.1']
    #allocation7 [shape = 'u8[6144]{0}', space=vmem, size = 0x1800, scoped, tag = 'input window, operand 2']
    #allocation8 [shape = 'u8[6144]{0}', space=vmem, size = 0x1800, scoped, tag = 'input window, operand 3']
    #allocation9 [shape = 's32[2]{0}', space=sflag, size = 0x8, scoped, tag = 'scoped memory for tpu_custom_call.1']
    #allocation10 [shape = 'u8[6144]{0}', space=vmem, size = 0x1800, scoped, tag = 'output window, operand 0']
    #allocation11 [shape = 'u8[6144]{0}', space=vmem, size = 0x1800, scoped, tag = 'output window, operand 1']
    #allocation12 [shape = 's32[2]{0}', space=sflag, size = 0x8, scoped, tag = 'scoped memory for tpu_custom_call.1']
    #allocation13 [shape = 'u8[6144]{0}', space=vmem, size = 0x1800, scoped, tag = 'output window, operand 2']
    %12 = vsyncpa [#allocation3], 0
    %s13 = scalar_lea.sflag [#allocation3], 1
    %14 = vsyncpa %s13, 0
    %15 = vsyncpa [#allocation6], 0
    %s16 = scalar_lea.sflag [#allocation6], 1
    %17 = vsyncpa %s16, 0
    %18 = vsyncpa [#allocation9], 0
    %s19 = scalar_lea.sflag [#allocation9], 1
    %20 = vsyncpa %s19, 0
    %21 = vsyncpa [#allocation4], 0
    %s22 = scalar_lea.sflag [#allocation4], 1
    %23 = vsyncpa %s22, 0
    %24 = vsyncpa [#allocation12], 0
    %s25 = scalar_lea.sflag [#allocation12], 1
    %26 = vsyncpa %s25, 0
    loop: start=0, step=1, limit=4
    $region2: #{tpu_custom_call.1} parent=1 // loop_pre_header
      _
    $region3: #{tpu_custom_call.1} parent=1 // loop_header
      %s28 = sphi 0, %s32
      %p29 = scmp.ge.s32.totalorder %s28, 4
      %s35 = sphi 0, %s47
      %s36 = sphi 0, %s43
      %s37 = sphi 0, %s35
      %s38 = sphi 0, %s36
      %s39 = sphi 0, %s37
      %s40 = sphi 0, %s38
      %s52 = sphi 0, %s54
      %s55 = sphi 0, %s52
      %s56 = sphi 0, %s55
      %s72 = sphi 0, %s56
      %s80 = sphi 0, %s82
      %s83 = sphi 0, %s80
      %s84 = sphi 0, %s83
      %s100 = sphi 0, %s84
      %s108 = sphi 0, %s110
      %s111 = sphi 0, %s108
      %s112 = sphi 0, %s111
      %s128 = sphi 0, %s112
      %s136 = sphi 0, %s138
      %s139 = sphi 0, %s136
      %s140 = sphi 0, %s139
      %s156 = sphi 0, %s140
      %s164 = sphi 0, %s166
      %s167 = sphi 0, %s164
      %s168 = sphi 0, %s167
      %s184 = sphi 0, %s168
      %s192 = sphi 0, %s194
      %s195 = sphi 0, %s192
      %s196 = sphi 0, %s195
      %s212 = sphi 0, %s196
      %s220 = sphi 0, %s222
      %s223 = sphi 0, %s220
      %s224 = sphi 0, %s223
      %s240 = sphi 0, %s224
    $region4: #{tpu_custom_call.1} parent=1 // loop_header_branch
      %31 = sbr.rel (%p29) target = $region8
    $region5: #{tpu_custom_call.1} parent=1 // loop_body
      %s33 = ssub.s32 %s28, 1
      %s34 = ssub.s32 %s28, 2
      %s41 = sadd.s32 1, %s36
      %p42 = scmp.ge.s32.totalorder %s41, 1
      %s43 = scalar_select %p42, 0, %s41
      %s44 = sadd.s32 1, %s35
      %s45 = scalar_select %p42, %s44, %s35
      %p46 = scmp.ge.s32.totalorder %s45, 2
      %s47 = scalar_select %p46, 0, %s45
      %s48 = ssub.s32 %s35, %s47
      %s49 = ssub.s32 %s36, %s43
      %s50 = sor.u32 %s48, %s49
      %p51 = scmp.eq.s32.totalorder %s50, 0
      %s53 = sadd.s32 %s52, 1
      %s54 = scalar_select %p51, %s52, %s53
      %p57 = pneg %p51
      %p58 = scmp.eq.s32.totalorder %s28, 1
      %p59 = por %p57, %p58
      %p60 = scmp.ne.s32.totalorder %s52, %s55
      %p61 = scmp.eq.s32.totalorder %s28, 0
      %p62 = por %p60, %p61
      %p63 = scmp.ne.s32.totalorder %s52, %s55
      %p64 = scmp.eq.s32.totalorder %s33, 1
      %p65 = por %p63, %p64
      %p66 = scmp.ne.s32.totalorder %s55, %s56
      %p67 = scmp.eq.s32.totalorder %s33, 0
      %p68 = por %p66, %p67
      %p69 = scmp.ne.s32.totalorder %s55, %s56
      %p70 = scmp.eq.s32.totalorder %s34, 1
      %p71 = por %p69, %p70
      %p73 = scmp.ne.s32.totalorder %s56, %s72
      %p74 = scmp.eq.s32.totalorder %s34, 0
      %p75 = por %p73, %p74
      %s76 = ssub.s32 %s35, %s47
      %s77 = ssub.s32 %s36, %s43
      %s78 = sor.u32 %s76, %s77
      %p79 = scmp.eq.s32.totalorder %s78, 0
      %s81 = sadd.s32 %s80, 1
      %s82 = scalar_select %p79, %s80, %s81
      %p85 = pneg %p79
      %p86 = scmp.eq.s32.totalorder %s28, 1
      %p87 = por %p85, %p86
      %p88 = scmp.ne.s32.totalorder %s80, %s83
      %p89 = scmp.eq.s32.totalorder %s28, 0
      %p90 = por %p88, %p89
      %p91 = scmp.ne.s32.totalorder %s80, %s83
      %p92 = scmp.eq.s32.totalorder %s33, 1
      %p93 = por %p91, %p92
      %p94 = scmp.ne.s32.totalorder %s83, %s84
      %p95 = scmp.eq.s32.totalorder %s33, 0
      %p96 = por %p94, %p95
      %p97 = scmp.ne.s32.totalorder %s83, %s84
      %p98 = scmp.eq.s32.totalorder %s34, 1
      %p99 = por %p97, %p98
      %p101 = scmp.ne.s32.totalorder %s84, %s100
      %p102 = scmp.eq.s32.totalorder %s34, 0
      %p103 = por %p101, %p102
      %s104 = ssub.s32 %s35, %s47
      %s105 = ssub.s32 %s36, %s43
      %s106 = sor.u32 %s104, %s105
      %p107 = scmp.eq.s32.totalorder %s106, 0
      %s109 = sadd.s32 %s108, 1
      %s110 = scalar_select %p107, %s108, %s109
      %p113 = pneg %p107
      %p114 = scmp.eq.s32.totalorder %s28, 1
      %p115 = por %p113, %p114
      %p116 = scmp.ne.s32.totalorder %s108, %s111
      %p117 = scmp.eq.s32.totalorder %s28, 0
      %p118 = por %p116, %p117
      %p119 = scmp.ne.s32.totalorder %s108, %s111
      %p120 = scmp.eq.s32.totalorder %s33, 1
      %p121 = por %p119, %p120
      %p122 = scmp.ne.s32.totalorder %s111, %s112
      %p123 = scmp.eq.s32.totalorder %s33, 0
      %p124 = por %p122, %p123
      %p125 = scmp.ne.s32.totalorder %s111, %s112
      %p126 = scmp.eq.s32.totalorder %s34, 1
      %p127 = por %p125, %p126
      %p129 = scmp.ne.s32.totalorder %s112, %s128
      %p130 = scmp.eq.s32.totalorder %s34, 0
      %p131 = por %p129, %p130
      %s132 = ssub.s32 %s35, %s47
      %s133 = ssub.s32 %s36, %s43
      %s134 = sor.u32 %s132, %s133
      %p135 = scmp.eq.s32.totalorder %s134, 0
      %s137 = sadd.s32 %s136, 1
      %s138 = scalar_select %p135, %s136, %s137
      %p141 = pneg %p135
      %p142 = scmp.eq.s32.totalorder %s28, 1
      %p143 = por %p141, %p142
      %p144 = scmp.ne.s32.totalorder %s136, %s139
      %p145 = scmp.eq.s32.totalorder %s28, 0
      %p146 = por %p144, %p145
      %p147 = scmp.ne.s32.totalorder %s136, %s139
      %p148 = scmp.eq.s32.totalorder %s33, 1
      %p149 = por %p147, %p148
      %p150 = scmp.ne.s32.totalorder %s139, %s140
      %p151 = scmp.eq.s32.totalorder %s33, 0
      %p152 = por %p150, %p151
      %p153 = scmp.ne.s32.totalorder %s139, %s140
      %p154 = scmp.eq.s32.totalorder %s34, 1
      %p155 = por %p153, %p154
      %p157 = scmp.ne.s32.totalorder %s140, %s156
      %p158 = scmp.eq.s32.totalorder %s34, 0
      %p159 = por %p157, %p158
      %s160 = ssub.s32 %s35, %s47
      %s161 = ssub.s32 %s36, %s43
      %s162 = sor.u32 %s160, %s161
      %p163 = scmp.eq.s32.totalorder %s162, 0
      %s165 = sadd.s32 %s164, 1
      %s166 = scalar_select %p163, %s164, %s165
      %p169 = pneg %p163
      %p170 = scmp.eq.s32.totalorder %s28, 1
      %p171 = por %p169, %p170
      %p172 = scmp.ne.s32.totalorder %s164, %s167
      %p173 = scmp.eq.s32.totalorder %s28, 0
      %p174 = por %p172, %p173
      %p175 = scmp.ne.s32.totalorder %s164, %s167
      %p176 = scmp.eq.s32.totalorder %s33, 1
      %p177 = por %p175, %p176
      %p178 = scmp.ne.s32.totalorder %s167, %s168
      %p179 = scmp.eq.s32.totalorder %s33, 0
      %p180 = por %p178, %p179
      %p181 = scmp.ne.s32.totalorder %s167, %s168
      %p182 = scmp.eq.s32.totalorder %s34, 1
      %p183 = por %p181, %p182
      %p185 = scmp.ne.s32.totalorder %s168, %s184
      %p186 = scmp.eq.s32.totalorder %s34, 0
      %p187 = por %p185, %p186
      %s188 = ssub.s32 %s35, %s47
      %s189 = ssub.s32 %s36, %s43
      %s190 = sor.u32 %s188, %s189
      %p191 = scmp.eq.s32.totalorder %s190, 0
      %s193 = sadd.s32 %s192, 1
      %s194 = scalar_select %p191, %s192, %s193
      %p197 = pneg %p191
      %p198 = scmp.eq.s32.totalorder %s28, 1
      %p199 = por %p197, %p198
      %p200 = scmp.ne.s32.totalorder %s192, %s195
      %p201 = scmp.eq.s32.totalorder %s28, 0
      %p202 = por %p200, %p201
      %p203 = scmp.ne.s32.totalorder %s192, %s195
      %p204 = scmp.eq.s32.totalorder %s33, 1
      %p205 = por %p203, %p204
      %p206 = scmp.ne.s32.totalorder %s195, %s196
      %p207 = scmp.eq.s32.totalorder %s33, 0
      %p208 = por %p206, %p207
      %p209 = scmp.ne.s32.totalorder %s195, %s196
      %p210 = scmp.eq.s32.totalorder %s34, 1
      %p211 = por %p209, %p210
      %p213 = scmp.ne.s32.totalorder %s196, %s212
      %p214 = scmp.eq.s32.totalorder %s34, 0
      %p215 = por %p213, %p214
      %s216 = ssub.s32 %s35, %s47
      %s217 = ssub.s32 %s36, %s43
      %s218 = sor.u32 %s216, %s217
      %p219 = scmp.eq.s32.totalorder %s218, 0
      %s221 = sadd.s32 %s220, 1
      %s222 = scalar_select %p219, %s220, %s221
      %p225 = pneg %p219
      %p226 = scmp.eq.s32.totalorder %s28, 1
      %p227 = por %p225, %p226
      %p228 = scmp.ne.s32.totalorder %s220, %s223
      %p229 = scmp.eq.s32.totalorder %s28, 0
      %p230 = por %p228, %p229
      %p231 = scmp.ne.s32.totalorder %s220, %s223
      %p232 = scmp.eq.s32.totalorder %s33, 1
      %p233 = por %p231, %p232
      %p234 = scmp.ne.s32.totalorder %s223, %s224
      %p235 = scmp.eq.s32.totalorder %s33, 0
      %p236 = por %p234, %p235
      %p237 = scmp.ne.s32.totalorder %s223, %s224
      %p238 = scmp.eq.s32.totalorder %s34, 1
      %p239 = por %p237, %p238
      %p241 = scmp.ne.s32.totalorder %s224, %s240
      %p242 = scmp.eq.s32.totalorder %s34, 0
      %p243 = por %p241, %p242
      %p244 = scmp.le.s32.totalorder 1, %s28
      %p245 = scmp.lt.s32.totalorder %s28, 3
      %p246 = pnand %p244, %p245
      %p247 = pneg %p246
      // Predicated region
      $region9: #{tpu_custom_call.1} parent=5 // pred_check
        _
      $region10: #{tpu_custom_call.1} parent=5 // pred_check_branch
        %249 = sbr.rel (%p246) target = $region12
      $region11: #{tpu_custom_call.1} parent=5 // pred_region
        %s250 = ssub.s32 %s28, 1
      $region12: #{tpu_custom_call.1} parent=5 // pred_fallthru
        _
      %p251 = scmp.lt.s32.totalorder %s28, 2
      // Predicated region
      $region13: #{tpu_custom_call.1} parent=5 // pred_check
        %p252 = pneg %p251
      $region14: #{tpu_custom_call.1} parent=5 // pred_check_branch
        %254 = sbr.rel (%p252) target = $region16
      $region15: #{tpu_custom_call.1} parent=5 // pred_region
        // Predicated region
        $region17: #{tpu_custom_call.1} parent=15 // pred_check
          %p255 = pneg %p62
        $region18: #{tpu_custom_call.1} parent=15 // pred_check_branch
          %257 = sbr.rel (%p255) target = $region20
        $region19: #{tpu_custom_call.1} parent=15 // pred_region
          %s258 = sand.u32 %s52, 1
          %s259 = scalar_lea.sflag [#allocation3], %s258
          %s260 = sand.u32 %s52, 1
          %s261 = smul.addr %s260, 2
          %s262 = scalar_lea.vmem [#allocation2], %s261
          %s264 = ssub.s32 32, 32
          %265 = vsyncadd %s259, %s264
          %s266 = sadd.s32 %s36, %s35
          %s267 = smul.addr %s266, 32
          %s268 = scalar_lea.hbm %s0, %s267
          %s270 = sshll.u32 %s262, 4
          %s271 = int_to_ptr.vmem [resolvable:$true] %s270
          %273 = dma.hbm_to_vmem [thread:$0]  %s268, 32, %s271, %s259
        $region20: #{tpu_custom_call.1} parent=15 // pred_fallthru
          _
        // Predicated region
        $region21: #{tpu_custom_call.1} parent=15 // pred_check
          %p274 = pneg %p90
        $region22: #{tpu_custom_call.1} parent=15 // pred_check_branch
          %276 = sbr.rel (%p274) target = $region24
        $region23: #{tpu_custom_call.1} parent=15 // pred_region
          %s277 = sand.u32 %s28, 1
          %s278 = scalar_lea.sflag [#allocation6], %s277
          %s279 = sand.u32 %s80, 1
          %s280 = smul.addr %s279, 2
          %s281 = scalar_lea.vmem [#allocation5], %s280
          %s283 = ssub.s32 32, 32
          %284 = vsyncadd %s278, %s283
          %s285 = sadd.s32 %s36, %s35
          %s286 = smul.addr %s285, 32
          %s287 = scalar_lea.hbm %s1, %s286
          %s289 = sshll.u32 %s281, 4
          %s290 = int_to_ptr.vmem [resolvable:$true] %s289
          %292 = dma.hbm_to_vmem [thread:$0]  %s287, 32, %s290, %s278
        $region24: #{tpu_custom_call.1} parent=15 // pred_fallthru
          _
        // Predicated region
        $region25: #{tpu_custom_call.1} parent=15 // pred_check
          %p293 = pneg %p118
        $region26: #{tpu_custom_call.1} parent=15 // pred_check_branch
          %295 = sbr.rel (%p293) target = $region28
        $region27: #{tpu_custom_call.1} parent=15 // pred_region
          %s296 = sand.u32 %s28, 1
          %s297 = scalar_lea.sflag [#allocation6], %s296
          %s298 = sand.u32 %s108, 1
          %s299 = smul.addr %s298, 6
          %s300 = scalar_lea.vmem [#allocation7], %s299
          %s302 = ssub.s32 96, 96
          %303 = vsyncadd %s297, %s302
          %s304 = smul.addr %s35, 3
          %s305 = sadd.s32 %s36, %s304
          %s306 = smul.addr %s305, 32
          %s307 = scalar_lea.hbm %s2, %s306
          %s308 = sshll.u32 %s300, 4
          %s309 = int_to_ptr.vmem [resolvable:$true] %s308
          %314 = dma.hbm_to_vmem [thread:$0]  %s307, 96, %s309, %s297, 32, 32, 2
        $region28: #{tpu_custom_call.1} parent=15 // pred_fallthru
          _
        // Predicated region
        $region29: #{tpu_custom_call.1} parent=15 // pred_check
          %p315 = pneg %p146
        $region30: #{tpu_custom_call.1} parent=15 // pred_check_branch
          %317 = sbr.rel (%p315) target = $region32
        $region31: #{tpu_custom_call.1} parent=15 // pred_region
          %s318 = sand.u32 %s136, 1
          %s319 = scalar_lea.sflag [#allocation9], %s318
          %s320 = sand.u32 %s136, 1
          %s321 = smul.addr %s320, 6
          %s322 = scalar_lea.vmem [#allocation8], %s321
          %s324 = ssub.s32 96, 96
          %325 = vsyncadd %s319, %s324
          %s326 = smul.addr %s35, 3
          %s327 = sadd.s32 %s36, %s326
          %s328 = smul.addr %s327, 32
          %s329 = scalar_lea.hbm %s3, %s328
          %s330 = sshll.u32 %s322, 4
          %s331 = int_to_ptr.vmem [resolvable:$true] %s330
          %336 = dma.hbm_to_vmem [thread:$0]  %s329, 96, %s331, %s319, 32, 32, 2
        $region32: #{tpu_custom_call.1} parent=15 // pred_fallthru
          _
      $region16: #{tpu_custom_call.1} parent=5 // pred_fallthru
        _
      %p337 = scmp.le.s32.totalorder 1, %s28
      %p338 = scmp.lt.s32.totalorder %s28, 3
      %p339 = pnand %p337, %p338
      %p340 = pneg %p339
      // Predicated region
      $region33: #{tpu_custom_call.1} parent=5 // pred_check
        _
      $region34: #{tpu_custom_call.1} parent=5 // pred_check_branch
        %342 = sbr.rel (%p339) target = $region36
      $region35: #{tpu_custom_call.1} parent=5 // pred_region
        %s343 = ssub.s32 %s28, 1
        %s344 = sand.u32 %s55, 1
        %s345 = scalar_lea.sflag [#allocation3], %s344
        %s346 = sand.u32 %s55, 1
        %s347 = smul.addr %s346, 2
        %s348 = scalar_lea.vmem [#allocation2], %s347
        // Predicated region
        $region37: #{tpu_custom_call.1} parent=35 // pred_check
          %p349 = pneg %p68
        $region38: #{tpu_custom_call.1} parent=35 // pred_check_branch
          %351 = sbr.rel (%p349) target = $region40
        $region39: #{tpu_custom_call.1} parent=35 // pred_region
          %352 = dma.done %s345, 32
        $region40: #{tpu_custom_call.1} parent=35 // pred_fallthru
          _
        %s353 = sand.u32 %s33, 1
        %s354 = scalar_lea.sflag [#allocation6], %s353
        %s355 = sand.u32 %s83, 1
        %s356 = smul.addr %s355, 2
        %s357 = scalar_lea.vmem [#allocation5], %s356
        // Predicated region
        $region41: #{tpu_custom_call.1} parent=35 // pred_check
          %p358 = pneg %p96
        $region42: #{tpu_custom_call.1} parent=35 // pred_check_branch
          %360 = sbr.rel (%p358) target = $region44
        $region43: #{tpu_custom_call.1} parent=35 // pred_region
          %361 = dma.done %s354, 32
        $region44: #{tpu_custom_call.1} parent=35 // pred_fallthru
          _
        %s362 = sand.u32 %s33, 1
        %s363 = scalar_lea.sflag [#allocation6], %s362
        %s364 = sand.u32 %s111, 1
        %s365 = smul.addr %s364, 6
        %s366 = scalar_lea.vmem [#allocation7], %s365
        // Predicated region
        $region45: #{tpu_custom_call.1} parent=35 // pred_check
          %p367 = pneg %p124
        $region46: #{tpu_custom_call.1} parent=35 // pred_check_branch
          %369 = sbr.rel (%p367) target = $region48
        $region47: #{tpu_custom_call.1} parent=35 // pred_region
          %370 = dma.done %s363, 96
        $region48: #{tpu_custom_call.1} parent=35 // pred_fallthru
          _
        %s371 = sand.u32 %s139, 1
        %s372 = scalar_lea.sflag [#allocation9], %s371
        %s373 = sand.u32 %s139, 1
        %s374 = smul.addr %s373, 6
        %s375 = scalar_lea.vmem [#allocation8], %s374
        // Predicated region
        $region49: #{tpu_custom_call.1} parent=35 // pred_check
          %p376 = pneg %p152
        $region50: #{tpu_custom_call.1} parent=35 // pred_check_branch
          %378 = sbr.rel (%p376) target = $region52
        $region51: #{tpu_custom_call.1} parent=35 // pred_region
          %379 = dma.done %s372, 96
        $region52: #{tpu_custom_call.1} parent=35 // pred_fallthru
          _
        %s380 = sand.u32 %s55, 1
        %s381 = scalar_lea.sflag [#allocation3], %s380
        %s382 = sand.u32 %s55, 1
        %s383 = smul.addr %s382, 2
        %s384 = scalar_lea.vmem [#allocation2], %s383
        %p385 = pneg %p68
        %p386 = pneg %p65
        %s387 = sand.u32 %s33, 1
        %s388 = scalar_lea.sflag [#allocation6], %s387
        %s389 = sand.u32 %s83, 1
        %s390 = smul.addr %s389, 2
        %s391 = scalar_lea.vmem [#allocation5], %s390
        %p392 = pneg %p96
        %p393 = pneg %p93
        %s394 = sand.u32 %s33, 1
        %s395 = scalar_lea.sflag [#allocation6], %s394
        %s396 = sand.u32 %s111, 1
        %s397 = smul.addr %s396, 6
        %s398 = scalar_lea.vmem [#allocation7], %s397
        %p399 = pneg %p124
        %p400 = pneg %p121
        %s401 = sand.u32 %s139, 1
        %s402 = scalar_lea.sflag [#allocation9], %s401
        %s403 = sand.u32 %s139, 1
        %s404 = smul.addr %s403, 6
        %s405 = scalar_lea.vmem [#allocation8], %s404
        %p406 = pneg %p152
        %p407 = pneg %p149
        %p408 = pneg %p180
        %p409 = pneg %p177
        %s410 = sand.u32 %s167, 1
        %s411 = scalar_lea.sflag [#allocation4], %s410
        %s412 = sand.u32 %s167, 1
        %s413 = smul.addr %s412, 6
        %s414 = scalar_lea.vmem [#allocation10], %s413
        %p415 = pneg %p208
        %p416 = pneg %p205
        %s417 = sand.u32 %s33, 1
        %s418 = scalar_lea.sflag [#allocation12], %s417
        %s419 = sand.u32 %s195, 1
        %s420 = smul.addr %s419, 6
        %s421 = scalar_lea.vmem [#allocation11], %s420
        %p422 = pneg %p236
        %p423 = pneg %p233
        %s424 = sand.u32 %s33, 1
        %s425 = scalar_lea.sflag [#allocation12], %s424
        %s426 = sand.u32 %s223, 1
        %s427 = smul.addr %s426, 6
        %s428 = scalar_lea.vmem [#allocation13], %s427
        %v429 = vld [vmem:[%s348] sm:$0x3]
        %v430 = vld [vmem:[%s357] sm:$0x3]
        %v431 = vsub.f32 %v430, %v429
        %v432 = vmul.f32 %v431, 1.442695
        %v433 = vpow.pop %v432
        %v434 = vadd.f32 %v433, 1.0
        %v435 = vrcp.pop %v434
        %v436 = vmul.f32 1.0, %v435
        %v437 = vsub.f32 1.0, %v436
        %v438 = vld [vmem:[%s366] sm:$0x3]
        %v439 = vld [vmem:[%s366 + $0x2] sm:$0x3]
        %v440 = vld [vmem:[%s366 + $0x4] sm:$0x3]
        %v441 = vld [vmem:[%s375] sm:$0x3]
        %v442 = vld [vmem:[%s375 + $0x2] sm:$0x3]
        %v443 = vld [vmem:[%s375 + $0x4] sm:$0x3]
        %v444 = vmul.f32 %v436, %v441
        %v445 = vmul.f32 %v436, %v442
        %v446 = vmul.f32 %v436, %v443
        %v447 = vmul.f32 %v437, %v438
        %v448 = vmul.f32 %v437, %v439
        %v449 = vmul.f32 %v437, %v440
        %v450 = vadd.f32 %v444, %v447
        %v451 = vadd.f32 %v445, %v448
        %v452 = vadd.f32 %v446, %v449
        %453 = vst [vmem:[%s414] sm:$0x3] %v450
        %454 = vst [vmem:[%s414 + $0x2] sm:$0x3] %v451
        %455 = vst [vmem:[%s414 + $0x4] sm:$0x3] %v452
        %456 = vst [vmem:[%s421] sm:$0x3] %v436
        %457 = vst [vmem:[%s421 + $0x2] sm:$0x3] %v436
        %458 = vst [vmem:[%s421 + $0x4] sm:$0x3] %v436
        %459 = vst [vmem:[%s428] sm:$0x3] %v437
        %460 = vst [vmem:[%s428 + $0x2] sm:$0x3] %v437
        %461 = vst [vmem:[%s428 + $0x4] sm:$0x3] %v437
        %s462 = sand.u32 %s167, 1
        %s463 = scalar_lea.sflag [#allocation4], %s462
        %s464 = sand.u32 %s167, 1
        %s465 = smul.addr %s464, 6
        %s466 = scalar_lea.vmem [#allocation10], %s465
        %s467 = sand.u32 %s33, 1
        %s468 = scalar_lea.sflag [#allocation12], %s467
        %s469 = sand.u32 %s195, 1
        %s470 = smul.addr %s469, 6
        %s471 = scalar_lea.vmem [#allocation11], %s470
        %s472 = sand.u32 %s33, 1
        %s473 = scalar_lea.sflag [#allocation12], %s472
        %s474 = sand.u32 %s223, 1
        %s475 = smul.addr %s474, 6
        %s476 = scalar_lea.vmem [#allocation13], %s475
        // Predicated region
        $region53: #{tpu_custom_call.1} parent=35 // pred_check
          %p477 = pneg %p177
        $region54: #{tpu_custom_call.1} parent=35 // pred_check_branch
          %479 = sbr.rel (%p477) target = $region56
        $region55: #{tpu_custom_call.1} parent=35 // pred_region
          %s481 = ssub.s32 96, 96
          %482 = vsyncadd %s463, %s481
          %s483 = smul.addr %s37, 3
          %s484 = sadd.s32 %s38, %s483
          %s485 = smul.addr %s484, 32
          %s486 = scalar_lea.hbm %s4, %s485
          %s487 = sshll.u32 %s466, 4
          %s488 = int_to_ptr.vmem [resolvable:$true] %s487
          %493 = dma.vmem_to_hbm [thread:$0]  %s488, 96, %s486, %s463, 32, 32, 2
        $region56: #{tpu_custom_call.1} parent=35 // pred_fallthru
          _
        // Predicated region
        $region57: #{tpu_custom_call.1} parent=35 // pred_check
          %p494 = pneg %p205
        $region58: #{tpu_custom_call.1} parent=35 // pred_check_branch
          %496 = sbr.rel (%p494) target = $region60
        $region59: #{tpu_custom_call.1} parent=35 // pred_region
          %s498 = ssub.s32 96, 96
          %499 = vsyncadd %s468, %s498
          %s500 = smul.addr %s37, 3
          %s501 = sadd.s32 %s38, %s500
          %s502 = smul.addr %s501, 32
          %s503 = scalar_lea.hbm %s5, %s502
          %s504 = sshll.u32 %s471, 4
          %s505 = int_to_ptr.vmem [resolvable:$true] %s504
          %510 = dma.vmem_to_hbm [thread:$0]  %s505, 96, %s503, %s468, 32, 32, 2
        $region60: #{tpu_custom_call.1} parent=35 // pred_fallthru
          _
        // Predicated region
        $region61: #{tpu_custom_call.1} parent=35 // pred_check
          %p511 = pneg %p233
        $region62: #{tpu_custom_call.1} parent=35 // pred_check_branch
          %513 = sbr.rel (%p511) target = $region64
        $region63: #{tpu_custom_call.1} parent=35 // pred_region
          %s515 = ssub.s32 96, 96
          %516 = vsyncadd %s473, %s515
          %s517 = smul.addr %s37, 3
          %s518 = sadd.s32 %s38, %s517
          %s519 = smul.addr %s518, 32
          %s520 = scalar_lea.hbm %s6, %s519
          %s521 = sshll.u32 %s476, 4
          %s522 = int_to_ptr.vmem [resolvable:$true] %s521
          %527 = dma.vmem_to_hbm [thread:$0]  %s522, 96, %s520, %s473, 32, 32, 2
        $region64: #{tpu_custom_call.1} parent=35 // pred_fallthru
          _
      $region36: #{tpu_custom_call.1} parent=5 // pred_fallthru
        _
      %p528 = scmp.le.s32.totalorder 2, %s28
      // Predicated region
      $region65: #{tpu_custom_call.1} parent=5 // pred_check
        %p529 = pneg %p528
      $region66: #{tpu_custom_call.1} parent=5 // pred_check_branch
        %531 = sbr.rel (%p529) target = $region68
      $region67: #{tpu_custom_call.1} parent=5 // pred_region
        %s532 = ssub.s32 %s28, 2
        // Predicated region
        $region69: #{tpu_custom_call.1} parent=67 // pred_check
          %p533 = pneg %p183
        $region70: #{tpu_custom_call.1} parent=67 // pred_check_branch
          %535 = sbr.rel (%p533) target = $region72
        $region71: #{tpu_custom_call.1} parent=67 // pred_region
          %s536 = sand.u32 %s168, 1
          %s537 = scalar_lea.sflag [#allocation4], %s536
          %s538 = sand.u32 %s168, 1
          %s539 = smul.addr %s538, 6
          %s540 = scalar_lea.vmem [#allocation10], %s539
          %541 = dma.done %s537, 96
        $region72: #{tpu_custom_call.1} parent=67 // pred_fallthru
          _
        // Predicated region
        $region73: #{tpu_custom_call.1} parent=67 // pred_check
          %p542 = pneg %p211
        $region74: #{tpu_custom_call.1} parent=67 // pred_check_branch
          %544 = sbr.rel (%p542) target = $region76
        $region75: #{tpu_custom_call.1} parent=67 // pred_region
          %s545 = sand.u32 %s34, 1
          %s546 = scalar_lea.sflag [#allocation12], %s545
          %s547 = sand.u32 %s196, 1
          %s548 = smul.addr %s547, 6
          %s549 = scalar_lea.vmem [#allocation11], %s548
          %550 = dma.done %s546, 96
        $region76: #{tpu_custom_call.1} parent=67 // pred_fallthru
          _
        // Predicated region
        $region77: #{tpu_custom_call.1} parent=67 // pred_check
          %p551 = pneg %p239
        $region78: #{tpu_custom_call.1} parent=67 // pred_check_branch
          %553 = sbr.rel (%p551) target = $region80
        $region79: #{tpu_custom_call.1} parent=67 // pred_region
          %s554 = sand.u32 %s34, 1
          %s555 = scalar_lea.sflag [#allocation12], %s554
          %s556 = sand.u32 %s224, 1
          %s557 = smul.addr %s556, 6
          %s558 = scalar_lea.vmem [#allocation13], %s557
          %559 = dma.done %s555, 96
        $region80: #{tpu_custom_call.1} parent=67 // pred_fallthru
          _
      $region68: #{tpu_custom_call.1} parent=5 // pred_fallthru
        _
    $region6: #{tpu_custom_call.1} parent=1 // loop_footer
      %s32 = sadd.s32 1, %s28
    $region7: #{tpu_custom_call.1} parent=1 // loop_footer_branch
      %27 = sbr.rel target = $region3
    $region8: #{tpu_custom_call.1} parent=1 // loop_exit
      _
    %560 = vsyncpa [#allocation3], 1
    %s561 = scalar_lea.sflag [#allocation3], 1
    %562 = vsyncpa %s561, 1
    %563 = vsyncpa [#allocation6], 1
    %s564 = scalar_lea.sflag [#allocation6], 1
    %565 = vsyncpa %s564, 1
    %566 = vsyncpa [#allocation9], 1
    %s567 = scalar_lea.sflag [#allocation9], 1
    %568 = vsyncpa %s567, 1
    %569 = vsyncpa [#allocation4], 1
    %s570 = scalar_lea.sflag [#allocation4], 1
    %571 = vsyncpa %s570, 1
    %572 = vsyncpa [#allocation12], 1
    %s573 = scalar_lea.sflag [#allocation12], 1
    %574 = vsyncpa %s573, 1

</llo_original>
